<compile_context>
chip_gen: v7x
topology: tpu7x:2x2x1
jax: 0.10.0
libtpu: 0.0.40
codegen_flags: <defaults>
</compile_context>

<pallas_src>
import functools

import jax
import jax.numpy as jnp
from jax.experimental import pallas as pl
from jax.experimental.pallas import tpu as pltpu

LANES = 128


def model3_lstm_kernel(x_ref, w_ref, b_ref, out_ref, *, input_size, hidden_size):
    """One batch tile of the full forward pass.

    x_ref  : (TB, input_size) f32
    w_ref  : (input_size + H + 128, 128) f32 packed weight slab
             rows [0, in)           fused LSTM gate weight [W_i | W_g | W_o | 0]
             rows [in, in+H)        layer1 weight          [W1 | 0]
             rows [in+H, in+H+128)  layer2 weight          [[W2, 0]; [0, 0]]
    b_ref  : (8, 128) f32 bias slab: row 0 = fused gate bias, row 1 = b1,
             row 2 = b2 with -1e30 in the padded class columns.
    out_ref: (TB, 128) f32 softmax probabilities, lane dense; cols >= C are 0.
    """
    H = hidden_size
    x = x_ref[...]

    # ---- single-step LSTM cell: one fused [in, 128] matmul for [i|g|o] ------
    wg = w_ref[0:input_size, :]
    gates = jnp.dot(x, wg, preferred_element_type=jnp.float32) + b_ref[0:1, :]
    sg = jax.nn.sigmoid(gates)                     # EUP, full 128 lanes
    tg = jnp.tanh(gates)
    i = sg[:, 0:H]
    g = tg[:, H:2 * H]
    o = sg[:, 2 * H:3 * H]
    c = i * g                                      # c_0 == 0 -> f-gate term vanishes
    h = o * jnp.tanh(c)                            # hn, (TB, H)

    # ---- head: relu -> layer1 -> relu -> layer2 -> softmax ------------------
    h = jnp.maximum(h, 0.0)
    r1 = input_size
    w1 = w_ref[r1:r1 + H, :]                       # (H, 128), cols >= H2 are 0
    h1 = jnp.dot(h, w1, preferred_element_type=jnp.float32) + b_ref[1:2, :]
    h1 = jnp.maximum(h1, 0.0)                      # padded cols stay exactly 0

    r2 = r1 + H
    w2 = w_ref[r2:r2 + LANES, :]                   # (128, 128); real block [0:H2, 0:C]
    logits = jnp.dot(h1, w2, preferred_element_type=jnp.float32) + b_ref[2:3, :]
    # padded class columns carry bias -1e30 -> exp underflows to exactly 0

    m = jnp.max(logits, axis=-1, keepdims=True)
    e = jnp.exp(logits - m)
    denom = jnp.sum(e, axis=-1, keepdims=True)
    # Exact divide (perf review correctness concern: approx reciprocal made row
    # sums miss 1.0 by ~4e-3; EUP/VPU have plenty of slack, so this is free).
    out_ref[...] = (e / denom).astype(out_ref.dtype)


def pack_params(params, input_size, hidden_size, hidden2_size, num_classes):
    """Pack the 10 small parameter tensors into one lane-dense weight slab and
    one bias slab (fewer tiny DMAs; the kernel is launch-overhead bound)."""
    H, H2, C = hidden_size, hidden2_size, num_classes
    wg = jnp.zeros((input_size, LANES), jnp.float32)
    wg = (wg.at[:, 0:H].set(params["wi"])
            .at[:, H:2 * H].set(params["wg"])
            .at[:, 2 * H:3 * H].set(params["wo"]))
    w1 = jnp.zeros((H, LANES), jnp.float32).at[:, 0:H2].set(params["w1"])
    w2 = jnp.zeros((LANES, LANES), jnp.float32).at[0:H2, 0:C].set(params["w2"])
    w_slab = jnp.concatenate([wg, w1, w2], axis=0)     # (in + H + 128, 128)

    b_slab = jnp.zeros((8, LANES), jnp.float32)
    b_slab = (b_slab.at[0, 0:H].set(params["bi"][0])
                    .at[0, H:2 * H].set(params["bg"][0])
                    .at[0, 2 * H:3 * H].set(params["bo"][0]))
    b_slab = b_slab.at[1, 0:H2].set(params["b1"][0])
    b_slab = b_slab.at[2, :].set(-1e30)                # kill padded class columns
    b_slab = b_slab.at[2, 0:C].set(params["b2"][0])
    return w_slab, b_slab


def model3_lstm_forward(word, w_slab, b_slab, *, input_size, hidden_size,
                        hidden2_size, num_classes, batch_tile=512):
    """Returns (probs, None), matching the PyTorch forward with labels=None."""
    # TODO(synk): CrossEntropyLoss branch (labels is not None) not implemented.
    B = word.shape[0]
    assert input_size % 8 == 0 and hidden_size % 8 == 0, \
        "weight-slab row slices must be sublane (8) aligned"
    assert 3 * hidden_size <= LANES and hidden2_size <= LANES and num_classes <= LANES

    kernel = functools.partial(model3_lstm_kernel, input_size=input_size,
                               hidden_size=hidden_size)

    def cost(rows):
        flops = 2 * rows * (input_size * 3 * hidden_size
                            + hidden_size * hidden2_size
                            + hidden2_size * num_classes)
        transcendentals = rows * 4 * LANES              # advisory only
        bytes_accessed = 4 * int(rows * input_size + w_slab.size + b_slab.size
                                 + rows * LANES)
        return pl.CostEstimate(flops=flops, transcendentals=transcendentals,
                               bytes_accessed=bytes_accessed)

    vmem = pl.BlockSpec(memory_space=pltpu.MemorySpace.VMEM)

    if B <= batch_tile:
        # Launch-overhead-bound regime: a single grid-less call (a grid would
        # only add ~0.35 us/step of overhead at this size).
        out = pl.pallas_call(
            kernel,
            out_shape=jax.ShapeDtypeStruct((B, LANES), jnp.float32),
            in_specs=[vmem, vmem, vmem],
            out_specs=vmem,
            cost_estimate=cost(B),
        )(word, w_slab, b_slab)
        return out[:, :num_classes], None

    # Large batch: amortize pallas_call overhead with ONE call and a batch-tile
    # grid.  Slabs use a constant index_map so they stay VMEM-resident; the
    # batch axis is "parallel" so v7x megacore splits tiles across both
    # TensorCores.  Double-buffered footprint 2*(TB*in + TB*128)*4 B is far
    # below the scoped-VMEM defaults (16 MiB v5e / 32 MiB v6e / 32 MiB v7x),
    # so no vmem_limit_bytes override is needed.
    TB = batch_tile
    n_tiles = pl.cdiv(B, TB)
    Bp = n_tiles * TB
    if Bp != B:
        word = jnp.pad(word, ((0, Bp - B), (0, 0)))
    w_rows = w_slab.shape[0]

    out = pl.pallas_call(
        kernel,
        out_shape=jax.ShapeDtypeStruct((Bp, LANES), jnp.float32),
        grid=(n_tiles,),
        in_specs=[
            pl.BlockSpec((TB, input_size), lambda i: (i, 0)),
            pl.BlockSpec((w_rows, LANES), lambda i: (0, 0)),
            pl.BlockSpec((8, LANES), lambda i: (0, 0)),
        ],
        out_specs=pl.BlockSpec((TB, LANES), lambda i: (i, 0)),
        compiler_params=pltpu.CompilerParams(
            dimension_semantics=("parallel",)),
        cost_estimate=cost(Bp),
    )(word, w_slab, b_slab)
    return out[:B, :num_classes], None


def init_params(key, input_size, hidden_size, hidden2_size, num_classes):
    """Deterministic params. nn.LSTM packs weight_ih_l0 as (4H, in) in gate
    order [i, f, g, o]; here per-gate weights are kept pre-transposed to
    (in, H) and each gate bias represents b_ih + b_hh.  The f-gate params are
    unused because c_0 == 0 (exact for this module)."""
    ks = jax.random.split(key, 10)

    def u(k, shape, s):
        return jax.random.uniform(k, shape, jnp.float32, -s, s)

    s_lstm = 1.0 / float(hidden_size) ** 0.5
    s_l1 = 1.0 / float(hidden_size) ** 0.5
    s_l2 = 1.0 / float(hidden2_size) ** 0.5
    return {
        "wi": u(ks[0], (input_size, hidden_size), s_lstm),
        "wg": u(ks[1], (input_size, hidden_size), s_lstm),
        "wo": u(ks[2], (input_size, hidden_size), s_lstm),
        "bi": u(ks[3], (1, hidden_size), s_lstm),
        "bg": u(ks[4], (1, hidden_size), s_lstm),
        "bo": u(ks[5], (1, hidden_size), s_lstm),
        "w1": u(ks[6], (hidden_size, hidden2_size), s_l1),
        "b1": u(ks[7], (1, hidden2_size), s_l1),
        "w2": u(ks[8], (hidden2_size, num_classes), s_l2),
        "b2": u(ks[9], (1, num_classes), s_l2),
    }


def reference_forward(word, params):
    """Pure-JAX reference of the same forward (high-precision matmuls)."""
    hp = jax.lax.Precision.HIGHEST
    i = jax.nn.sigmoid(jnp.dot(word, params["wi"], precision=hp) + params["bi"])
    g = jnp.tanh(jnp.dot(word, params["wg"], precision=hp) + params["bg"])
    o = jax.nn.sigmoid(jnp.dot(word, params["wo"], precision=hp) + params["bo"])
    h = jnp.maximum(o * jnp.tanh(i * g), 0.0)
    h1 = jnp.maximum(jnp.dot(h, params["w1"], precision=hp) + params["b1"], 0.0)
    logits = jnp.dot(h1, params["w2"], precision=hp) + params["b2"]
    return jax.nn.softmax(logits, axis=-1)


if __name__ == "__main__":
    # Shapes consistent with the module's forward: word is [batch, input_size],
    # nn.LSTM with num_stacked_layers = 1 (only hn of a single step is used).
    input_size = 16
    hidden_size = 32
    hidden2_size = 64
    num_classes = 10

    key = jax.random.PRNGKey(0)
    k_small, k_big, k_p = jax.random.split(key, 3)
    params = init_params(k_p, input_size, hidden_size, hidden2_size, num_classes)
    w_slab, b_slab = pack_params(params, input_size, hidden_size, hidden2_size,
                                 num_classes)
    fwd = functools.partial(
        model3_lstm_forward, input_size=input_size, hidden_size=hidden_size,
        hidden2_size=hidden2_size, num_classes=num_classes)

    # 1) Small batch -> single grid-less pallas_call (original use case).
    batch = 8
    word = jax.random.normal(k_small, (batch, input_size), dtype=jnp.float32)
    probs, loss = fwd(word, w_slab, b_slab)
    probs = jax.block_until_ready(probs)
    ref = reference_forward(word, params)
    assert probs.shape == (batch, num_classes)
    assert loss is None
    assert bool(jnp.all(jnp.abs(jnp.sum(probs, axis=-1) - 1.0) < 1e-3))
    assert bool(jnp.all(jnp.abs(probs - ref) < 5e-3))

    # 2) Larger batch -> one pallas_call with a "parallel" batch-tile grid
    #    (exercises the structural change from the perf review).
    big_batch, tile = 512, 128
    word_big = jax.random.normal(k_big, (big_batch, input_size), dtype=jnp.float32)
    probs_big, _ = fwd(word_big, w_slab, b_slab, batch_tile=tile)
    probs_big = jax.block_until_ready(probs_big)
    ref_big = reference_forward(word_big, params)
    assert probs_big.shape == (big_batch, num_classes)
    assert bool(jnp.all(jnp.abs(jnp.sum(probs_big, axis=-1) - 1.0) < 1e-3))
    assert bool(jnp.all(jnp.abs(probs_big - ref_big) < 5e-3))

    print("KERNEL_OK")
</pallas_src>

<mosaic_0001>
module attributes {stable_mosaic.version = 11 : i64} {
  func.func @model3_lstm_kernel(%arg0: memref<8x16xf32, #tpu.memory_space<vmem>>, %arg1: memref<176x128xf32, #tpu.memory_space<vmem>>, %arg2: memref<8x128xf32, #tpu.memory_space<vmem>>, %arg3: memref<8x128xf32, #tpu.memory_space<vmem>>) attributes {dimension_semantics = [], scalar_prefetch = 0 : i64, scratch_operands = 0 : i64, tpu.core_type = #tpu.core_type<tc>} {
    %c0 = arith.constant 0 : index
    %c0_0 = arith.constant 0 : index
    %0 = vector.load %arg0[%c0, %c0_0] : memref<8x16xf32, #tpu.memory_space<vmem>>, vector<8x16xf32>
    %c0_1 = arith.constant 0 : index
    %c0_2 = arith.constant 0 : index
    %1 = vector.load %arg1[%c0_1, %c0_2] : memref<176x128xf32, #tpu.memory_space<vmem>>, vector<16x128xf32>
    %cst = arith.constant dense<0.000000e+00> : vector<8x128xf32>
    %2 = tpu.matmul %0, %1, %cst {dimension_numbers = #tpu.dot_dimension_numbers<[1], [0], [0], [1], [0, 0, 1, 1], [], []>} : vector<8x16xf32>, vector<16x128xf32>, vector<8x128xf32> -> vector<8x128xf32>
    %c0_3 = arith.constant 0 : index
    %c0_4 = arith.constant 0 : index
    %3 = vector.load %arg2[%c0_3, %c0_4] : memref<8x128xf32, #tpu.memory_space<vmem>>, vector<1x128xf32>
    %4 = vector.broadcast %3 : vector<1x128xf32> to vector<8x128xf32>
    %5 = arith.addf %2, %4 : vector<8x128xf32>
    %6 = arith.negf %5 : vector<8x128xf32>
    %7 = math.exp %6 : vector<8x128xf32>
    %cst_5 = arith.constant 1.000000e+00 : f32
    %8 = vector.broadcast %cst_5 : f32 to vector<8x128xf32>
    %9 = arith.addf %8, %7 : vector<8x128xf32>
    %10 = arith.divf %8, %9 : vector<8x128xf32>
    %11 = math.tanh %5 : vector<8x128xf32>
    %12 = vector.extract_strided_slice %10 {offsets = [0, 0], sizes = [8, 32], strides = [1, 1]} : vector<8x128xf32> to vector<8x32xf32>
    %13 = vector.extract_strided_slice %11 {offsets = [0, 32], sizes = [8, 32], strides = [1, 1]} : vector<8x128xf32> to vector<8x32xf32>
    %14 = vector.extract_strided_slice %10 {offsets = [0, 64], sizes = [8, 32], strides = [1, 1]} : vector<8x128xf32> to vector<8x32xf32>
    %15 = arith.mulf %12, %13 : vector<8x32xf32>
    %16 = math.tanh %15 : vector<8x32xf32>
    %17 = arith.mulf %14, %16 : vector<8x32xf32>
    %cst_6 = arith.constant 0.000000e+00 : f32
    %18 = vector.broadcast %cst_6 : f32 to vector<8x32xf32>
    %19 = arith.maximumf %17, %18 : vector<8x32xf32>
    %c16 = arith.constant 16 : index
    %c0_7 = arith.constant 0 : index
    %20 = vector.load %arg1[%c16, %c0_7] : memref<176x128xf32, #tpu.memory_space<vmem>>, vector<32x128xf32>
    %cst_8 = arith.constant dense<0.000000e+00> : vector<8x128xf32>
    %21 = tpu.matmul %19, %20, %cst_8 {dimension_numbers = #tpu.dot_dimension_numbers<[1], [0], [0], [1], [0, 0, 1, 1], [], []>} : vector<8x32xf32>, vector<32x128xf32>, vector<8x128xf32> -> vector<8x128xf32>
    %c1 = arith.constant 1 : index
    %c0_9 = arith.constant 0 : index
    %22 = vector.load %arg2[%c1, %c0_9] : memref<8x128xf32, #tpu.memory_space<vmem>>, vector<1x128xf32>
    %23 = vector.broadcast %22 : vector<1x128xf32> to vector<8x128xf32>
    %24 = arith.addf %21, %23 : vector<8x128xf32>
    %cst_10 = arith.constant 0.000000e+00 : f32
    %25 = vector.broadcast %cst_10 : f32 to vector<8x128xf32>
    %26 = arith.maximumf %24, %25 : vector<8x128xf32>
    %c48 = arith.constant 48 : index
    %c0_11 = arith.constant 0 : index
    %27 = vector.load %arg1[%c48, %c0_11] : memref<176x128xf32, #tpu.memory_space<vmem>>, vector<128x128xf32>
    %cst_12 = arith.constant dense<0.000000e+00> : vector<8x128xf32>
    %28 = tpu.matmul %26, %27, %cst_12 {dimension_numbers = #tpu.dot_dimension_numbers<[1], [0], [0], [1], [0, 0, 1, 1], [], []>} : vector<8x128xf32>, vector<128x128xf32>, vector<8x128xf32> -> vector<8x128xf32>
    %c2 = arith.constant 2 : index
    %c0_13 = arith.constant 0 : index
    %29 = vector.load %arg2[%c2, %c0_13] : memref<8x128xf32, #tpu.memory_space<vmem>>, vector<1x128xf32>
    %30 = vector.broadcast %29 : vector<1x128xf32> to vector<8x128xf32>
    %31 = arith.addf %28, %30 : vector<8x128xf32>
    %cst_14 = arith.constant dense<0xFF800000> : vector<8xf32>
    %32 = vector.multi_reduction <maximumf>, %31, %cst_14 [1] : vector<8x128xf32> to vector<8xf32>
    %33 = vector.shape_cast %32 : vector<8xf32> to vector<8x1xf32>
    %34 = vector.broadcast %33 : vector<8x1xf32> to vector<8x128xf32>
    %35 = arith.subf %31, %34 : vector<8x128xf32>
    %36 = math.exp %35 : vector<8x128xf32>
    %cst_15 = arith.constant dense<0.000000e+00> : vector<8xf32>
    %37 = vector.multi_reduction <add>, %36, %cst_15 [1] : vector<8x128xf32> to vector<8xf32>
    %38 = vector.shape_cast %37 : vector<8xf32> to vector<8x1xf32>
    %39 = vector.broadcast %38 : vector<8x1xf32> to vector<8x128xf32>
    %40 = arith.divf %36, %39 : vector<8x128xf32>
    %c0_16 = arith.constant 0 : index
    %c0_17 = arith.constant 0 : index
    %41 = vector.load %arg3[%c0_16, %c0_17] : memref<8x128xf32, #tpu.memory_space<vmem>>, vector<8x128xf32>
    tpu.vector_store %arg3[%c0_16, %c0_17], %40 {strides = array<i32>} : memref<8x128xf32, #tpu.memory_space<vmem>>, vector<8x128xf32>,
    return
  }
}

</mosaic_0001>

<llo_original>
// kernel: tpu_custom_call.1
$region0: #{tpu_custom_call.1}
  #allocation0 [shape = 'u32[]', space=smem, size = 0x4, offset = 0x4, fixed_abs, tag = 'smem constant byte address 0x4 - core index']
  #allocation1 [shape = 'u32[144,128]{1,0:T(1,128)}', space=vmem, size = 0x12000, scoped, tag = 'internal scratch']
  %s0 = inlined_call_operand.hbm [shape: f32[8,16], index: 0, kind: input, shape index: {}]
  %s1 = inlined_call_operand.hbm [shape: f32[176,128], index: 1, kind: input, shape index: {}]
  %s2 = inlined_call_operand.hbm [shape: f32[8,128], index: 2, kind: input, shape index: {}]
  %s3 = inlined_call_operand.hbm [shape: f32[8,128], index: 3, kind: output, shape index: {}]
  %s4 = sld [smem:[#allocation0]]
  $region34: #{tpu_custom_call.1} parent=0
    _
  %s6 = ssub.s32 1, %s4
  %s7 = scalar_select 0, %s6, %s4
  $region1: #{tpu_custom_call.1} parent=0
    #allocation2 [shape = 'u8[4096]{0}', space=vmem, size = 0x1000, scoped, tag = 'input window, operand 0, single buffered']
    #allocation3 [shape = 's32[1]{0}', space=sflag, size = 0x4, scoped, tag = 'scoped memory for tpu_custom_call.1']
    #allocation4 [shape = 's32[1]{0}', space=sflag, size = 0x4, scoped, tag = 'scoped memory for tpu_custom_call.1']
    #allocation5 [shape = 'u8[90112]{0}', space=vmem, size = 0x16000, scoped, tag = 'input window, operand 1, single buffered']
    #allocation6 [shape = 's32[1]{0}', space=sflag, size = 0x4, scoped, tag = 'scoped memory for tpu_custom_call.1']
    #allocation7 [shape = 'u8[4096]{0}', space=vmem, size = 0x1000, scoped, tag = 'input window, operand 2, single buffered']
    #allocation8 [shape = 'u8[4096]{0}', space=vmem, size = 0x1000, scoped, tag = 'output window, operand 0, single buffered']
    %8 = vsyncpa [#allocation3], 0
    %9 = vsyncpa [#allocation6], 0
    %10 = vsyncpa [#allocation4], 0
    // Predicated region
    $region2: #{tpu_custom_call.1} parent=1 // pred_check
      _
    $region3: #{tpu_custom_call.1} parent=1 // pred_check_branch
      %12 = sbr.rel (0) target = $region5
    $region4: #{tpu_custom_call.1} parent=1 // pred_region
      %s14 = ssub.s32 128, 128
      %15 = vsyncadd [#allocation3], %s14
      %s17 = sshll.u32 [#allocation2], 4
      %s18 = int_to_ptr.vmem [resolvable:$true] %s17
      %20 = dma.hbm_to_vmem [thread:$0]  %s0, 128, %s18, [#allocation3]
    $region5: #{tpu_custom_call.1} parent=1 // pred_fallthru
      _
    // Predicated region
    $region6: #{tpu_custom_call.1} parent=1 // pred_check
      _
    $region7: #{tpu_custom_call.1} parent=1 // pred_check_branch
      %22 = sbr.rel (0) target = $region9
    $region8: #{tpu_custom_call.1} parent=1 // pred_region
      %s24 = ssub.s32 2816, 2816
      %25 = vsyncadd [#allocation6], %s24
      %s26 = sshll.u32 [#allocation5], 4
      %s27 = int_to_ptr.vmem [resolvable:$true] %s26
      %32 = dma.hbm_to_vmem [thread:$0]  %s1, 2816, %s27, [#allocation6], 128, 128, 8
    $region9: #{tpu_custom_call.1} parent=1 // pred_fallthru
      _
    // Predicated region
    $region10: #{tpu_custom_call.1} parent=1 // pred_check
      _
    $region11: #{tpu_custom_call.1} parent=1 // pred_check_branch
      %34 = sbr.rel (0) target = $region13
    $region12: #{tpu_custom_call.1} parent=1 // pred_region
      %s36 = ssub.s32 128, 128
      %37 = vsyncadd [#allocation6], %s36
      %s39 = sshll.u32 [#allocation7], 4
      %s40 = int_to_ptr.vmem [resolvable:$true] %s39
      %42 = dma.hbm_to_vmem [thread:$0]  %s2, 128, %s40, [#allocation6]
    $region13: #{tpu_custom_call.1} parent=1 // pred_fallthru
      _
    // Predicated region
    $region14: #{tpu_custom_call.1} parent=1 // pred_check
      _
    $region15: #{tpu_custom_call.1} parent=1 // pred_check_branch
      %44 = sbr.rel (0) target = $region17
    $region16: #{tpu_custom_call.1} parent=1 // pred_region
      %45 = dma.done [#allocation3], 128
    $region17: #{tpu_custom_call.1} parent=1 // pred_fallthru
      _
    // Predicated region
    $region18: #{tpu_custom_call.1} parent=1 // pred_check
      _
    $region19: #{tpu_custom_call.1} parent=1 // pred_check_branch
      %47 = sbr.rel (0) target = $region21
    $region20: #{tpu_custom_call.1} parent=1 // pred_region
      %48 = dma.done [#allocation6], 2816
    $region21: #{tpu_custom_call.1} parent=1 // pred_fallthru
      _
    // Predicated region
    $region22: #{tpu_custom_call.1} parent=1 // pred_check
      _
    $region23: #{tpu_custom_call.1} parent=1 // pred_check_branch
      %50 = sbr.rel (0) target = $region25
    $region24: #{tpu_custom_call.1} parent=1 // pred_region
      %51 = dma.done [#allocation6], 128
    $region25: #{tpu_custom_call.1} parent=1 // pred_fallthru
      _
    %v52 = vld [vmem:[#allocation2] sm:$0xff]
    %v53 = vld [vmem:[#allocation5] sm:$0xff]
    %v54 = vld [vmem:[#allocation5 + $0x8] sm:$0xff]
    %v55 = vld [vmem:[#allocation7] sm:$0x1]
    %v56 = vlaneseq
    %v57 = vshrl.u32 %v56, 7
    %v58 = vsub.s32 0, %v57
    %v59 = vrot.slane %v55, %v58
    %vm60 = vcmask 130048
    %v62 = vsel %vm60, %v52, 0
    %64 = vmatprep.subr.mxu0 0.0
    %65 = vmatpush1.msra.mxu0 %v53
    %66 = vmatprep.subr.mxu0 0.0
    %67 = vmatpush1.msra.mxu0 %v54
    %68 = vmatprep.subr.mxu0 0.0
    %69 = vmatpush1.msra.mxu0 0.0
    %70 = vmatprep.subr.mxu0 0.0
    %71 = vmatpush1.msra.mxu0 0.0
    %72 = vmatprep.subr.mxu0 0.0
    %73 = vmatpush1.msra.mxu0 0.0
    %74 = vmatprep.subr.mxu0 0.0
    %75 = vmatpush1.msra.mxu0 0.0
    %76 = vmatprep.subr.mxu0 0.0
    %77 = vmatpush1.msra.mxu0 0.0
    %78 = vmatprep.subr.mxu0 0.0
    %79 = vmatpush1.msra.mxu0 0.0
    %80 = vmatprep.subr.mxu0 0.0
    %81 = vmatpush1.msra.mxu0 0.0
    %82 = vmatprep.subr.mxu0 0.0
    %83 = vmatpush1.msra.mxu0 0.0
    %84 = vmatprep.subr.mxu0 0.0
    %85 = vmatpush1.msra.mxu0 0.0
    %86 = vmatprep.subr.mxu0 0.0
    %87 = vmatpush1.msra.mxu0 0.0
    %88 = vmatprep.subr.mxu0 0.0
    %89 = vmatpush1.msra.mxu0 0.0
    %90 = vmatprep.subr.mxu0 0.0
    %91 = vmatpush1.msra.mxu0 0.0
    %92 = vmatprep.subr.mxu0 0.0
    %93 = vmatpush1.msra.mxu0 0.0
    %94 = vmatprep.subr.mxu0 0.0
    %95 = vmatpush1.msra.mxu0 0.0
    %96 = vmatprep.subr.mxu0 0.0
    %97 = vmatpush1.msra.mxu0 0.0
    %98 = vmatprep.subr.mxu0 0.0
    %99 = vmatpush1.msra.mxu0 0.0
    %100 = vmatprep.subr.mxu0 0.0
    %101 = vmatpush1.msra.mxu0 0.0
    %102 = vmatprep.subr.mxu0 0.0
    %103 = vmatpush1.msra.mxu0 0.0
    %104 = vmatprep.subr.mxu0 0.0
    %105 = vmatpush1.msra.mxu0 0.0
    %106 = vmatprep.subr.mxu0 0.0
    %107 = vmatpush1.msra.mxu0 0.0
    %108 = vmatprep.subr.mxu0 0.0
    %109 = vmatpush1.msra.mxu0 0.0
    %110 = vmatprep.subr.mxu0 0.0
    %111 = vmatpush1.msra.mxu0 0.0
    %112 = vmatprep.subr.mxu0 0.0
    %113 = vmatpush1.msra.mxu0 0.0
    %114 = vmatprep.subr.mxu0 0.0
    %115 = vmatpush1.msra.mxu0 0.0
    %116 = vmatprep.subr.mxu0 0.0
    %117 = vmatpush1.msra.mxu0 0.0
    %118 = vmatprep.subr.mxu0 0.0
    %119 = vmatpush1.msra.mxu0 0.0
    %120 = vmatprep.subr.mxu0 0.0
    %121 = vmatpush1.msra.mxu0 0.0
    %122 = vmatprep.subr.mxu0 0.0
    %123 = vmatpush1.msra.mxu0 0.0
    %124 = vmatprep.subr.mxu0 0.0
    %125 = vmatpush1.msra.mxu0 0.0
    %126 = vmatprep.subr.mxu0 0.0
    %127 = vmatpush1.msra.mxu0 0.0
    %128 = vmatprep.mubr.f32.mxu0 0.0
    %129 = vmatmul.mubr.f32.gmra.mrb[0].mxu0 %v62
    %v130 = vpop.f32.mrb[0].mxu0
    %v131 = vadd.f32 %v59, %v130
    %v132 = vpop.f32.mrb[0].mxu0
    %133 = vdwg.mxu0
    %v134 = vxor.u32 %v131, 2147483648
    %v135 = vmul.f32 %v134, 1.442695
    %v136 = vpow.pop %v135
    %v137 = vadd.f32 %v136, 1.0
    %v138 = vrcp.pop %v137
    %v139 = vmul.f32 1.0, %v138
    %v140 = vtanh.pop %v131
    %142 = vrot.lane.b32.xlu0 %v140, 96
    %v143 = vpop.permute.xlu0 %142
    %v145 = vmul.f32 %v139, %v143
    %v146 = vtanh.pop %v145
    %148 = vrot.lane.b32.xlu0 %v146, 64
    %v149 = vpop.permute.xlu0 %148
    %v151 = vmul.f32 %v139, %v149
    %v152 = vmax.f32 %v151, 0.0
    %v153 = vld [vmem:[#allocation5 + $0x10] sm:$0xff]
    %v154 = vld [vmem:[#allocation5 + $0x18] sm:$0xff]
    %v155 = vld [vmem:[#allocation5 + $0x20] sm:$0xff]
    %v156 = vld [vmem:[#allocation5 + $0x28] sm:$0xff]
    %v157 = vld [vmem:[#allocation7 + $0x1] sm:$0x1]
    %v158 = vlaneseq
    %v159 = vshrl.u32 %v158, 7
    %v160 = vsub.s32 0, %v159
    %v161 = vrot.slane %v157, %v160
    %163 = vrot.lane.b32.xlu0 %v152, 64
    %v164 = vpop.permute.xlu0 %163
    %vm165 = vcmask 261120
    %v166 = vsel %vm165, %v164, 0
    %168 = vmatprep.subr.mxu0 0.0
    %169 = vmatpush1.msra.mxu0 %v153
    %170 = vmatprep.subr.mxu0 0.0
    %171 = vmatpush1.msra.mxu0 %v154
    %172 = vmatprep.subr.mxu0 0.0
    %173 = vmatpush1.msra.mxu0 %v155
    %174 = vmatprep.subr.mxu0 0.0
    %175 = vmatpush1.msra.mxu0 %v156
    %176 = vmatprep.subr.mxu0 0.0
    %177 = vmatpush1.msra.mxu0 0.0
    %178 = vmatprep.subr.mxu0 0.0
    %179 = vmatpush1.msra.mxu0 0.0
    %180 = vmatprep.subr.mxu0 0.0
    %181 = vmatpush1.msra.mxu0 0.0
    %182 = vmatprep.subr.mxu0 0.0
    %183 = vmatpush1.msra.mxu0 0.0
    %184 = vmatprep.subr.mxu0 0.0
    %185 = vmatpush1.msra.mxu0 0.0
    %186 = vmatprep.subr.mxu0 0.0
    %187 = vmatpush1.msra.mxu0 0.0
    %188 = vmatprep.subr.mxu0 0.0
    %189 = vmatpush1.msra.mxu0 0.0
    %190 = vmatprep.subr.mxu0 0.0
    %191 = vmatpush1.msra.mxu0 0.0
    %192 = vmatprep.subr.mxu0 0.0
    %193 = vmatpush1.msra.mxu0 0.0
    %194 = vmatprep.subr.mxu0 0.0
    %195 = vmatpush1.msra.mxu0 0.0
    %196 = vmatprep.subr.mxu0 0.0
    %197 = vmatpush1.msra.mxu0 0.0
    %198 = vmatprep.subr.mxu0 0.0
    %199 = vmatpush1.msra.mxu0 0.0
    %200 = vmatprep.subr.mxu0 0.0
    %201 = vmatpush1.msra.mxu0 0.0
    %202 = vmatprep.subr.mxu0 0.0
    %203 = vmatpush1.msra.mxu0 0.0
    %204 = vmatprep.subr.mxu0 0.0
    %205 = vmatpush1.msra.mxu0 0.0
    %206 = vmatprep.subr.mxu0 0.0
    %207 = vmatpush1.msra.mxu0 0.0
    %208 = vmatprep.subr.mxu0 0.0
    %209 = vmatpush1.msra.mxu0 0.0
    %210 = vmatprep.subr.mxu0 0.0
    %211 = vmatpush1.msra.mxu0 0.0
    %212 = vmatprep.subr.mxu0 0.0
    %213 = vmatpush1.msra.mxu0 0.0
    %214 = vmatprep.subr.mxu0 0.0
    %215 = vmatpush1.msra.mxu0 0.0
    %216 = vmatprep.subr.mxu0 0.0
    %217 = vmatpush1.msra.mxu0 0.0
    %218 = vmatprep.subr.mxu0 0.0
    %219 = vmatpush1.msra.mxu0 0.0
    %220 = vmatprep.subr.mxu0 0.0
    %221 = vmatpush1.msra.mxu0 0.0
    %222 = vmatprep.subr.mxu0 0.0
    %223 = vmatpush1.msra.mxu0 0.0
    %224 = vmatprep.subr.mxu0 0.0
    %225 = vmatpush1.msra.mxu0 0.0
    %226 = vmatprep.subr.mxu0 0.0
    %227 = vmatpush1.msra.mxu0 0.0
    %228 = vmatprep.subr.mxu0 0.0
    %229 = vmatpush1.msra.mxu0 0.0
    %230 = vmatprep.subr.mxu0 0.0
    %231 = vmatpush1.msra.mxu0 0.0
    %232 = vmatprep.mubr.f32.mxu0 0.0
    %233 = vmatmul.mubr.f32.gmra.mrb[0].mxu0 %v166
    %v234 = vpop.f32.mrb[0].mxu0
    %v235 = vadd.f32 %v161, %v234
    %v236 = vpop.f32.mrb[0].mxu0
    %237 = vdwg.mxu0
    %v238 = vmax.f32 %v235, 0.0
    %v239 = vld [vmem:[#allocation5 + $0x30] sm:$0xff]
    %v240 = vld [vmem:[#allocation5 + $0x38] sm:$0xff]
    %v241 = vld [vmem:[#allocation5 + $0x40] sm:$0xff]
    %v242 = vld [vmem:[#allocation5 + $0x48] sm:$0xff]
    %v243 = vld [vmem:[#allocation5 + $0x50] sm:$0xff]
    %v244 = vld [vmem:[#allocation5 + $0x58] sm:$0xff]
    %v245 = vld [vmem:[#allocation5 + $0x60] sm:$0xff]
    %v246 = vld [vmem:[#allocation5 + $0x68] sm:$0xff]
    %v247 = vld [vmem:[#allocation5 + $0x70] sm:$0xff]
    %v248 = vld [vmem:[#allocation5 + $0x78] sm:$0xff]
    %v249 = vld [vmem:[#allocation5 + $0x80] sm:$0xff]
    %v250 = vld [vmem:[#allocation5 + $0x88] sm:$0xff]
    %v251 = vld [vmem:[#allocation5 + $0x90] sm:$0xff]
    %v252 = vld [vmem:[#allocation5 + $0x98] sm:$0xff]
    %v253 = vld [vmem:[#allocation5 + $0xa0] sm:$0xff]
    %v254 = vld [vmem:[#allocation5 + $0xa8] sm:$0xff]
    %v255 = vld [vmem:[#allocation7 + $0x2] sm:$0x1]
    %v256 = vlaneseq
    %v257 = vshrl.u32 %v256, 7
    %v258 = vsub.s32 0, %v257
    %v259 = vrot.slane %v255, %v258
    %260 = vmatprep.subr.mxu0 0.0
    %261 = vmatpush1.msra.mxu0 %v239
    %262 = vmatprep.subr.mxu0 0.0
    %263 = vmatpush1.msra.mxu0 %v240
    %264 = vmatprep.subr.mxu0 0.0
    %265 = vmatpush1.msra.mxu0 %v241
    %266 = vmatprep.subr.mxu0 0.0
    %267 = vmatpush1.msra.mxu0 %v242
    %268 = vmatprep.subr.mxu0 0.0
    %269 = vmatpush1.msra.mxu0 %v243
    %270 = vmatprep.subr.mxu0 0.0
    %271 = vmatpush1.msra.mxu0 %v244
    %272 = vmatprep.subr.mxu0 0.0
    %273 = vmatpush1.msra.mxu0 %v245
    %274 = vmatprep.subr.mxu0 0.0
    %275 = vmatpush1.msra.mxu0 %v246
    %276 = vmatprep.subr.mxu0 0.0
    %277 = vmatpush1.msra.mxu0 %v247
    %278 = vmatprep.subr.mxu0 0.0
    %279 = vmatpush1.msra.mxu0 %v248
    %280 = vmatprep.subr.mxu0 0.0
    %281 = vmatpush1.msra.mxu0 %v249
    %282 = vmatprep.subr.mxu0 0.0
    %283 = vmatpush1.msra.mxu0 %v250
    %284 = vmatprep.subr.mxu0 0.0
    %285 = vmatpush1.msra.mxu0 %v251
    %286 = vmatprep.subr.mxu0 0.0
    %287 = vmatpush1.msra.mxu0 %v252
    %288 = vmatprep.subr.mxu0 0.0
    %289 = vmatpush1.msra.mxu0 %v253
    %290 = vmatprep.subr.mxu0 0.0
    %291 = vmatpush1.msra.mxu0 %v254
    %292 = vmatprep.subr.mxu0 0.0
    %293 = vmatpush1.msra.mxu0 0.0
    %294 = vmatprep.subr.mxu0 0.0
    %295 = vmatpush1.msra.mxu0 0.0
    %296 = vmatprep.subr.mxu0 0.0
    %297 = vmatpush1.msra.mxu0 0.0
    %298 = vmatprep.subr.mxu0 0.0
    %299 = vmatpush1.msra.mxu0 0.0
    %300 = vmatprep.subr.mxu0 0.0
    %301 = vmatpush1.msra.mxu0 0.0
    %302 = vmatprep.subr.mxu0 0.0
    %303 = vmatpush1.msra.mxu0 0.0
    %304 = vmatprep.subr.mxu0 0.0
    %305 = vmatpush1.msra.mxu0 0.0
    %306 = vmatprep.subr.mxu0 0.0
    %307 = vmatpush1.msra.mxu0 0.0
    %308 = vmatprep.subr.mxu0 0.0
    %309 = vmatpush1.msra.mxu0 0.0
    %310 = vmatprep.subr.mxu0 0.0
    %311 = vmatpush1.msra.mxu0 0.0
    %312 = vmatprep.subr.mxu0 0.0
    %313 = vmatpush1.msra.mxu0 0.0
    %314 = vmatprep.subr.mxu0 0.0
    %315 = vmatpush1.msra.mxu0 0.0
    %316 = vmatprep.subr.mxu0 0.0
    %317 = vmatpush1.msra.mxu0 0.0
    %318 = vmatprep.subr.mxu0 0.0
    %319 = vmatpush1.msra.mxu0 0.0
    %320 = vmatprep.subr.mxu0 0.0
    %321 = vmatpush1.msra.mxu0 0.0
    %322 = vmatprep.subr.mxu0 0.0
    %323 = vmatpush1.msra.mxu0 0.0
    %324 = vmatprep.mubr.f32.mxu0 0.0
    %325 = vmatmul.mubr.f32.gmra.mrb[0].mxu0 %v238
    %v326 = vpop.f32.mrb[0].mxu0
    %v327 = vadd.f32 %v259, %v326
    %v328 = vpop.f32.mrb[0].mxu0
    %329 = vdwg.mxu0
    %330 = vmax.xlane.f32.xlu0 %v327
    %v331 = vpop.xlane.xlu0 %330
    %v332 = vsub.f32 %v327, %v331
    %v333 = vmul.f32 %v332, 1.442695
    %v334 = vpow.pop %v333
    %335 = vadd.xlane.f32.xlu0 %v334
    %v336 = vpop.xlane.xlu0 %335
    %v337 = vrcp.pop %v336
    %v338 = vmul.f32 %v334, %v337
    %339 = vst [vmem:[#allocation8] sm:$0xff] %v338
    // Predicated region
    $region26: #{tpu_custom_call.1} parent=1 // pred_check
      _
    $region27: #{tpu_custom_call.1} parent=1 // pred_check_branch
      %341 = sbr.rel (0) target = $region29
    $region28: #{tpu_custom_call.1} parent=1 // pred_region
      %s343 = ssub.s32 128, 128
      %344 = vsyncadd [#allocation4], %s343
      %s346 = sshll.u32 [#allocation8], 4
      %s347 = int_to_ptr.vmem [resolvable:$true] %s346
      %349 = dma.vmem_to_hbm [thread:$0]  %s347, 128, %s3, [#allocation4]
    $region29: #{tpu_custom_call.1} parent=1 // pred_fallthru
      _
    // Predicated region
    $region30: #{tpu_custom_call.1} parent=1 // pred_check
      _
    $region31: #{tpu_custom_call.1} parent=1 // pred_check_branch
      %351 = sbr.rel (0) target = $region33
    $region32: #{tpu_custom_call.1} parent=1 // pred_region
      %352 = dma.done [#allocation4], 128
    $region33: #{tpu_custom_call.1} parent=1 // pred_fallthru
      _
    %353 = vsyncpa [#allocation3], 1
    %354 = vsyncpa [#allocation6], 1
    %355 = vsyncpa [#allocation4], 1

</llo_original>
